<compile_context>
chip_gen: v5e
topology: v5e:2x2
jax: 0.10.0
libtpu: 0.0.40
codegen_flags: <defaults>
</compile_context>

<pallas_src>
import functools

import jax
import jax.numpy as jnp
from jax.experimental import pallas as pl
from jax.experimental.pallas import tpu as pltpu


def _make_divisible(ch, divisor=8, min_ch=None):
    if min_ch is None:
        min_ch = divisor
    new_ch = max(min_ch, int(ch + divisor / 2) // divisor * divisor)
    if new_ch < 0.9 * ch:
        new_ch += divisor
    return new_ch


# ----------------------------- budgeting helpers -----------------------------

_MIN_STEPS = 4            # >= 2 pipelined grid steps per TensorCore on v7x megacore
_TARGET_BLOCK = 4 << 20   # ~4 MiB x blocks: ~86% of HBM roofline, cheap on every gen
_MAX_SLAB = 8 << 20       # largest per-sample slab the fused path will take


def _vmem_cap_bytes():
    """Per-generation VMEM cap with headroom for Mosaic internal scratch."""
    phys = 64 << 20                       # conservative default (v7x per-TC VMEM)
    try:
        info = pltpu.get_tpu_info()
        for name in ("vmem_capacity_bytes", "vmem_size_bytes", "vmem_bytes"):
            val = getattr(info, name, None)
            if val:
                phys = int(val)
                break
    except Exception:
        pass
    # 64 MiB parts (v7x) -> ~52 MiB cap; 128 MiB parts (v5e/v6e) -> ~100 MiB cap.
    return max(32 << 20, min(phys - (12 << 20), 100 << 20))


def _hw_tile(C, HW, itemsize, target):
    """HW tile (multiple of 128, or full HW) so a (1, C, tile) block is ~target bytes."""
    col = C * itemsize
    if HW < 128 or col * HW <= target:
        return HW
    tile = max(1, target // (col * 128)) * 128
    return int(max(128, min(tile, (HW // 128) * 128)))


def _scale_blocks(N, C, HW, itemsize, target, min_steps=_MIN_STEPS):
    """(batch block, HW tile) for the gate pass: ~target-byte blocks, >= min_steps steps."""
    hw_tile = _hw_tile(C, HW, itemsize, target)
    nb = int(min(max(1, target // (C * hw_tile * itemsize)), N))

    def steps(nb_, ht_):
        return pl.cdiv(N, nb_) * pl.cdiv(HW, ht_)

    # Deepen the grid (pipelining + megacore) before giving up on block size.
    while steps(nb, hw_tile) < min_steps and nb > 1:
        nb = max(1, nb // 2)
    while steps(nb, hw_tile) < min_steps and hw_tile > 128:
        new_tile = max(128, (hw_tile // 2) // 128 * 128)
        if new_tile == hw_tile:
            break
        hw_tile = new_tile
    return nb, hw_tile


def _fused_batch_block(N, slab_bytes, slab_f32_bytes, param_bytes, vmem_cap):
    """Batch block for the fused path, or None if the fused path is a bad fit."""
    if N < _MIN_STEPS or slab_bytes > _MAX_SLAB:
        return None
    nb = int(min(max(1, _TARGET_BLOCK // slab_bytes), max(1, N // _MIN_STEPS), N))
    while nb >= 1:
        # 2x double-buffered input + 2x output + f32 upcast/product temps + params + slack
        need = 4 * nb * slab_bytes + 2 * nb * slab_f32_bytes + 2 * param_bytes + (2 << 20)
        if need <= vmem_cap:
            return nb
        nb //= 2
    return None


# --------------------------------- kernels -----------------------------------

def _se_fused_kernel(x_ref, w1_ref, b1_ref, w2_ref, b2_ref, o_ref):
    """Fused path, one batch block per step.  x/o: (nb, C, HW); params are f32."""
    hw = x_ref.shape[-1]
    xf = x_ref[...].astype(jnp.float32)                                 # (nb, C, HW)

    # adaptive_avg_pool2d(x, (1,1)) : mean over spatial dims
    pooled = jnp.sum(xf, axis=-1) * (1.0 / hw)                          # (nb, C)

    # fc1 (1x1 conv) + ReLU
    s = jnp.dot(pooled, w1_ref[...], preferred_element_type=jnp.float32)
    s = jnp.maximum(s + b1_ref[...], 0.0)                               # (nb, SQ)

    # fc2 (1x1 conv) + hardsigmoid
    s = jnp.dot(s, w2_ref[...], preferred_element_type=jnp.float32) + b2_ref[...]
    s = jnp.clip(s + 3.0, 0.0, 6.0) * (1.0 / 6.0)                       # (nb, C)

    # Gate in f32 (v5e has no bf16 VALU); single cast on the store.
    o_ref[...] = (xf * s[:, :, None]).astype(o_ref.dtype)


def _pool_fc_kernel(x_ref, w1_ref, b1_ref, w2_ref, b2_ref, s_ref, acc_ref,
                    *, total_hw, masked):
    """Two-pass form, pass 1: grid = (N, HW_blocks); HW is the reduction axis.

    x_ref: (1, C, hw_tile).  s_ref: (1, C, 1) f32.  acc_ref: (1, C) f32 scratch.
    """
    h = pl.program_id(1)

    @pl.when(h == 0)
    def _():
        acc_ref[...] = jnp.zeros_like(acc_ref)

    xf = x_ref[...].astype(jnp.float32)                                 # (1, C, hw_tile)
    if masked:  # only the padded tail tile matters; cheap VPU select keeps it simple
        hw_tile = x_ref.shape[-1]
        col = jax.lax.broadcasted_iota(jnp.int32, x_ref.shape, 2)
        xf = jnp.where(h * hw_tile + col < total_hw, xf, 0.0)
    acc_ref[...] += jnp.sum(xf, axis=-1)                                # (1, C)

    @pl.when(h == pl.num_programs(1) - 1)
    def _():
        pooled = acc_ref[...] * (1.0 / total_hw)                        # (1, C)
        s = jnp.dot(pooled, w1_ref[...], preferred_element_type=jnp.float32)
        s = jnp.maximum(s + b1_ref[...], 0.0)
        s = jnp.dot(s, w2_ref[...], preferred_element_type=jnp.float32) + b2_ref[...]
        s = jnp.clip(s + 3.0, 0.0, 6.0) * (1.0 / 6.0)
        s_ref[...] = s[:, :, None]                                      # (1, C, 1)


def _scale_kernel(x_ref, s_ref, o_ref):
    """Two-pass form, pass 2: fully parallel gate.  x/o: (nb, C, hw_tile); s: (nb, C, 1)."""
    o_ref[...] = (x_ref[...].astype(jnp.float32) * s_ref[...]).astype(o_ref.dtype)


# --------------------------------- wrappers ----------------------------------

def _prep_params(w1, b1, w2, b2):
    """PyTorch layout (SQ,C)/(C,SQ) -> column-major f32 operands + 2-D bias rows."""
    SQ, C = w1.shape
    w1t = jnp.transpose(w1).astype(jnp.float32)          # (C, SQ)
    w2t = jnp.transpose(w2).astype(jnp.float32)          # (SQ, C)
    b1r = b1.reshape(1, SQ).astype(jnp.float32)
    b2r = b2.reshape(1, C).astype(jnp.float32)
    param_bytes = 4 * (w1t.size + w2t.size + b1r.size + b2r.size)
    return w1t, b1r, w2t, b2r, int(param_bytes)


def _param_specs(C, SQ):
    # Grid-invariant parameters (index_map always (0, 0)).
    # TODO(synk): single-buffer these (pipeline_mode=pl.Buffered(1)) for very large C.
    return [
        pl.BlockSpec((C, SQ), lambda *_: (0, 0)),
        pl.BlockSpec((1, SQ), lambda *_: (0, 0)),
        pl.BlockSpec((SQ, C), lambda *_: (0, 0)),
        pl.BlockSpec((1, C), lambda *_: (0, 0)),
    ]


def _se_fused_call(x_flat, w1t, b1r, w2t, b2r, nb, param_bytes, vmem_cap):
    N, C, HW = x_flat.shape
    SQ = w1t.shape[1]
    itemsize = jnp.dtype(x_flat.dtype).itemsize
    slab = C * HW * itemsize
    need = 4 * nb * slab + 2 * nb * C * HW * 4 + 2 * param_bytes + (2 << 20)
    vmem_limit = int(min(max(need, 32 << 20), vmem_cap))

    return pl.pallas_call(
        _se_fused_kernel,
        out_shape=jax.ShapeDtypeStruct((N, C, HW), x_flat.dtype),
        grid_spec=pltpu.PrefetchScalarGridSpec(
            num_scalar_prefetch=0,
            grid=(pl.cdiv(N, nb),),
            in_specs=[pl.BlockSpec((nb, C, HW), lambda n: (n, 0, 0))] + _param_specs(C, SQ),
            out_specs=pl.BlockSpec((nb, C, HW), lambda n: (n, 0, 0)),
        ),
        compiler_params=pltpu.CompilerParams(
            dimension_semantics=("parallel",),
            vmem_limit_bytes=vmem_limit),
    )(x_flat, w1t, b1r, w2t, b2r)


def _se_two_pass_call(x_flat, w1t, b1r, w2t, b2r, param_bytes, vmem_cap):
    N, C, HW = x_flat.shape
    SQ = w1t.shape[1]
    itemsize = jnp.dtype(x_flat.dtype).itemsize

    # ---- pass 1: mean pool -> fc1 -> ReLU -> fc2 -> hardsigmoid, s: (N, C, 1) f32 ----
    hw_tile1 = _hw_tile(C, HW, itemsize, _TARGET_BLOCK)
    masked = (HW % hw_tile1) != 0
    n_hw1 = pl.cdiv(HW, hw_tile1)
    blk1 = C * hw_tile1 * itemsize
    need1 = 2 * blk1 + 2 * C * hw_tile1 * 4 + 2 * param_bytes + C * 4 + (2 << 20)
    vmem1 = int(min(max(need1, 32 << 20), vmem_cap))

    s = pl.pallas_call(
        functools.partial(_pool_fc_kernel, total_hw=HW, masked=masked),
        out_shape=jax.ShapeDtypeStruct((N, C, 1), jnp.float32),
        grid_spec=pltpu.PrefetchScalarGridSpec(
            num_scalar_prefetch=0,
            grid=(N, n_hw1),
            in_specs=[pl.BlockSpec((1, C, hw_tile1), lambda n, h: (n, 0, h))]
            + _param_specs(C, SQ),
            out_specs=pl.BlockSpec((1, C, 1), lambda n, h: (n, 0, 0)),
            scratch_shapes=[pltpu.VMEM((1, C), jnp.float32)],
        ),
        compiler_params=pltpu.CompilerParams(
            dimension_semantics=("parallel", "arbitrary"),
            vmem_limit_bytes=vmem1),
    )(x_flat, w1t, b1r, w2t, b2r)

    # ---- pass 2: fully parallel gate over (batch-block, HW-tile) -------------------
    nb2, hw_tile2 = _scale_blocks(N, C, HW, itemsize, _TARGET_BLOCK)
    blk2 = nb2 * C * hw_tile2 * itemsize
    need2 = 4 * blk2 + 2 * nb2 * C * hw_tile2 * 4 + 4 * nb2 * C * 4 + (2 << 20)
    vmem2 = int(min(max(need2, 32 << 20), vmem_cap))

    out = pl.pallas_call(
        _scale_kernel,
        out_shape=jax.ShapeDtypeStruct((N, C, HW), x_flat.dtype),
        grid_spec=pltpu.PrefetchScalarGridSpec(
            num_scalar_prefetch=0,
            grid=(pl.cdiv(N, nb2), pl.cdiv(HW, hw_tile2)),
            in_specs=[
                pl.BlockSpec((nb2, C, hw_tile2), lambda n, h: (n, 0, h)),
                pl.BlockSpec((nb2, C, 1), lambda n, h: (n, 0, 0)),
            ],
            out_specs=pl.BlockSpec((nb2, C, hw_tile2), lambda n, h: (n, 0, h)),
        ),
        compiler_params=pltpu.CompilerParams(
            dimension_semantics=("parallel", "parallel"),
            vmem_limit_bytes=vmem2),
    )(x_flat, s)
    return out


def squeeze_excitation(x, w1, b1, w2, b2):
    """x: (N, C, H, W).  PyTorch-layout params: w1:(SQ,C) b1:(SQ,) w2:(C,SQ) b2:(C,)."""
    N, C, H, W = x.shape
    HW = H * W
    x_flat = x.reshape(N, C, HW)
    itemsize = jnp.dtype(x.dtype).itemsize

    w1t, b1r, w2t, b2r, param_bytes = _prep_params(w1, b1, w2, b2)
    vmem_cap = _vmem_cap_bytes()

    nb = _fused_batch_block(N, C * HW * itemsize, C * HW * 4, param_bytes, vmem_cap)
    if nb is not None:
        out = _se_fused_call(x_flat, w1t, b1r, w2t, b2r, nb, param_bytes, vmem_cap)
    else:
        out = _se_two_pass_call(x_flat, w1t, b1r, w2t, b2r, param_bytes, vmem_cap)
    return out.reshape(N, C, H, W)


# -------------------------------- reference ----------------------------------

def _reference(x, w1, b1, w2, b2):
    xf = x.astype(jnp.float32)
    pooled = jnp.mean(xf, axis=(2, 3))                               # (N, C)
    s = jnp.maximum(pooled @ w1.T + b1, 0.0)
    s = s @ w2.T + b2
    s = jnp.clip(s + 3.0, 0.0, 6.0) / 6.0
    return xf * s[:, :, None, None]


if __name__ == "__main__":
    key = jax.random.PRNGKey(0)
    kx, k1, k2, k3, k4, kx2 = jax.random.split(key, 6)

    # module config: input_c=16, squeeze_factor=4 -> squeeze_c = _make_divisible(4, 8) = 8
    C = 16
    SQ = _make_divisible(C // 4, 8)
    w1 = jax.random.normal(k1, (SQ, C), dtype=jnp.float32) * 0.2
    b1 = jax.random.normal(k2, (SQ,), dtype=jnp.float32) * 0.1
    w2 = jax.random.normal(k3, (C, SQ), dtype=jnp.float32) * 0.2
    b2 = jax.random.normal(k4, (C,), dtype=jnp.float32) * 0.1

    # --- shallow batch: exercises the two-pass (pool+FC kernel, parallel gate kernel) path
    N, H, W = 2, 16, 16
    x = jax.random.normal(kx, (N, C, H, W), dtype=jnp.float32)
    out = jax.block_until_ready(squeeze_excitation(x, w1, b1, w2, b2))
    ref = _reference(x, w1, b1, w2, b2)
    assert out.shape == (N, C, H, W) and out.dtype == x.dtype
    assert jnp.allclose(out.astype(jnp.float32), ref, atol=1e-4, rtol=1e-4), \
        "two-pass f32 mismatch vs reference"

    # bf16 activations (halved HBM traffic); gate computed in f32, single cast on store.
    x_bf = x.astype(jnp.bfloat16)
    out_bf = jax.block_until_ready(squeeze_excitation(x_bf, w1, b1, w2, b2))
    ref_bf = _reference(x_bf, w1, b1, w2, b2)
    assert out_bf.dtype == jnp.bfloat16
    assert jnp.allclose(out_bf.astype(jnp.float32), ref_bf, atol=5e-2, rtol=5e-2), \
        "two-pass bf16 mismatch vs reference"

    # --- deeper batch: exercises the fused single-pass path (>= 4 'parallel' grid steps)
    N2 = 8
    x2 = jax.random.normal(kx2, (N2, C, H, W), dtype=jnp.float32)
    out2 = jax.block_until_ready(squeeze_excitation(x2, w1, b1, w2, b2))
    ref2 = _reference(x2, w1, b1, w2, b2)
    assert jnp.allclose(out2.astype(jnp.float32), ref2, atol=1e-4, rtol=1e-4), \
        "fused f32 mismatch vs reference"

    print("KERNEL_OK")
</pallas_src>

<mosaic_0001>
module attributes {stable_mosaic.version = 11 : i64} {
  func.func @_pool_fc_kernel(%arg0: i32, %arg1: i32, %arg2: memref<1x16x256xf32, #tpu.memory_space<vmem>>, %arg3: memref<16x8xf32, #tpu.memory_space<vmem>>, %arg4: memref<1x8xf32, #tpu.memory_space<vmem>>, %arg5: memref<8x16xf32, #tpu.memory_space<vmem>>, %arg6: memref<1x16xf32, #tpu.memory_space<vmem>>, %arg7: memref<1x16x1xf32, #tpu.memory_space<vmem>>, %arg8: memref<1x16xf32, #tpu.memory_space<vmem>>) attributes {dimension_semantics = [#tpu.dimension_semantics<parallel>, #tpu.dimension_semantics<arbitrary>], iteration_bounds = array<i64: 2, 1>, scalar_prefetch = 0 : i64, scratch_operands = 1 : i64, tpu.core_type = #tpu.core_type<tc>, window_params = [{transform_indices = @transform_0, window_bounds = array<i64: 1, 16, 256>}, {pipeline_mode = #tpu.pipeline_mode<synchronous>, transform_indices = @transform_1, window_bounds = array<i64: 16, 8>}, {pipeline_mode = #tpu.pipeline_mode<synchronous>, transform_indices = @transform_2, window_bounds = array<i64: 1, 8>}, {pipeline_mode = #tpu.pipeline_mode<synchronous>, transform_indices = @transform_3, window_bounds = array<i64: 8, 16>}, {pipeline_mode = #tpu.pipeline_mode<synchronous>, transform_indices = @transform_4, window_bounds = array<i64: 1, 16>}, {transform_indices = @transform_5, window_bounds = array<i64: 1, 16, 1>}]} {
    %c0_i32 = arith.constant 0 : i32
    %0 = arith.cmpi eq, %arg1, %c0_i32 : i32
    %1 = arith.extui %0 : i1 to i32
    %c0_i32_0 = arith.constant 0 : i32
    %2 = arith.cmpi ne, %1, %c0_i32_0 : i32
    scf.if %2 {
      %cst_9 = arith.constant 0.000000e+00 : f32
      %11 = vector.broadcast %cst_9 : f32 to vector<1x16xf32>
      %c0_10 = arith.constant 0 : index
      %c0_11 = arith.constant 0 : index
      %12 = vector.load %arg8[%c0_10, %c0_11] : memref<1x16xf32, #tpu.memory_space<vmem>>, vector<1x16xf32>
      tpu.vector_store %arg8[%c0_10, %c0_11], %11 {strides = array<i32>} : memref<1x16xf32, #tpu.memory_space<vmem>>, vector<1x16xf32>,
    } else {
    }
    %c0 = arith.constant 0 : index
    %c0_1 = arith.constant 0 : index
    %c0_2 = arith.constant 0 : index
    %3 = vector.load %arg2[%c0, %c0_1, %c0_2] : memref<1x16x256xf32, #tpu.memory_space<vmem>>, vector<1x16x256xf32>
    %c0_3 = arith.constant 0 : index
    %c0_4 = arith.constant 0 : index
    %4 = vector.load %arg8[%c0_3, %c0_4] : memref<1x16xf32, #tpu.memory_space<vmem>>, vector<1x16xf32>
    %cst = arith.constant dense<0.000000e+00> : vector<1x16xf32>
    %5 = vector.multi_reduction <add>, %3, %cst [2] : vector<1x16x256xf32> to vector<1x16xf32>
    %6 = arith.addf %4, %5 : vector<1x16xf32>
    %c0_5 = arith.constant 0 : index
    %c0_6 = arith.constant 0 : index
    %7 = vector.load %arg8[%c0_5, %c0_6] : memref<1x16xf32, #tpu.memory_space<vmem>>, vector<1x16xf32>
    tpu.vector_store %arg8[%c0_5, %c0_6], %6 {strides = array<i32>} : memref<1x16xf32, #tpu.memory_space<vmem>>, vector<1x16xf32>,
    %c0_i32_7 = arith.constant 0 : i32
    %8 = arith.cmpi eq, %arg1, %c0_i32_7 : i32
    %9 = arith.extui %8 : i1 to i32
    %c0_i32_8 = arith.constant 0 : i32
    %10 = arith.cmpi ne, %9, %c0_i32_8 : i32
    scf.if %10 {
      %c0_9 = arith.constant 0 : index
      %c0_10 = arith.constant 0 : index
      %11 = vector.load %arg8[%c0_9, %c0_10] : memref<1x16xf32, #tpu.memory_space<vmem>>, vector<1x16xf32>
      %cst_11 = arith.constant 3.906250e-03 : f32
      %12 = vector.broadcast %cst_11 : f32 to vector<1x16xf32>
      %13 = arith.mulf %11, %12 : vector<1x16xf32>
      %c0_12 = arith.constant 0 : index
      %c0_13 = arith.constant 0 : index
      %14 = vector.load %arg3[%c0_12, %c0_13] : memref<16x8xf32, #tpu.memory_space<vmem>>, vector<16x8xf32>
      %cst_14 = arith.constant dense<0.000000e+00> : vector<1x8xf32>
      %15 = tpu.matmul %13, %14, %cst_14 {dimension_numbers = #tpu.dot_dimension_numbers<[1], [0], [0], [1], [0, 0, 1, 1], [], []>} : vector<1x16xf32>, vector<16x8xf32>, vector<1x8xf32> -> vector<1x8xf32>
      %c0_15 = arith.constant 0 : index
      %c0_16 = arith.constant 0 : index
      %16 = vector.load %arg4[%c0_15, %c0_16] : memref<1x8xf32, #tpu.memory_space<vmem>>, vector<1x8xf32>
      %17 = arith.addf %15, %16 : vector<1x8xf32>
      %cst_17 = arith.constant 0.000000e+00 : f32
      %18 = vector.broadcast %cst_17 : f32 to vector<1x8xf32>
      %19 = arith.maximumf %17, %18 : vector<1x8xf32>
      %c0_18 = arith.constant 0 : index
      %c0_19 = arith.constant 0 : index
      %20 = vector.load %arg5[%c0_18, %c0_19] : memref<8x16xf32, #tpu.memory_space<vmem>>, vector<8x16xf32>
      %cst_20 = arith.constant dense<0.000000e+00> : vector<1x16xf32>
      %21 = tpu.matmul %19, %20, %cst_20 {dimension_numbers = #tpu.dot_dimension_numbers<[1], [0], [0], [1], [0, 0, 1, 1], [], []>} : vector<1x8xf32>, vector<8x16xf32>, vector<1x16xf32> -> vector<1x16xf32>
      %c0_21 = arith.constant 0 : index
      %c0_22 = arith.constant 0 : index
      %22 = vector.load %arg6[%c0_21, %c0_22] : memref<1x16xf32, #tpu.memory_space<vmem>>, vector<1x16xf32>
      %23 = arith.addf %21, %22 : vector<1x16xf32>
      %cst_23 = arith.constant 3.000000e+00 : f32
      %24 = vector.broadcast %cst_23 : f32 to vector<1x16xf32>
      %25 = arith.addf %23, %24 : vector<1x16xf32>
      %cst_24 = arith.constant 0.000000e+00 : f32
      %cst_25 = arith.constant 6.000000e+00 : f32
      %26 = vector.broadcast %cst_24 : f32 to vector<1x16xf32>
      %27 = arith.maximumf %26, %25 : vector<1x16xf32>
      %28 = vector.broadcast %cst_25 : f32 to vector<1x16xf32>
      %29 = arith.minimumf %28, %27 : vector<1x16xf32>
      %cst_26 = arith.constant 0.166666672 : f32
      %30 = vector.broadcast %cst_26 : f32 to vector<1x16xf32>
      %31 = arith.mulf %29, %30 : vector<1x16xf32>
      %32 = vector.shape_cast %31 : vector<1x16xf32> to vector<1x16x1xf32>
      %c0_27 = arith.constant 0 : index
      %c0_28 = arith.constant 0 : index
      %c0_29 = arith.constant 0 : index
      %33 = vector.load %arg7[%c0_27, %c0_28, %c0_29] : memref<1x16x1xf32, #tpu.memory_space<vmem>>, vector<1x16x1xf32>
      tpu.vector_store %arg7[%c0_27, %c0_28, %c0_29], %32 {strides = array<i32>} : memref<1x16x1xf32, #tpu.memory_space<vmem>>, vector<1x16x1xf32>,
    } else {
    }
    return
  }
  func.func @transform_0(%arg0: i32, %arg1: i32) -> (i32, i32, i32) {
    %c0_i32 = arith.constant 0 : i32
    %c0_i32_0 = arith.constant 0 : i32
    return %arg0, %c0_i32, %arg1 : i32, i32, i32
  }
  func.func @transform_1(%arg0: i32, %arg1: i32) -> (i32, i32) {
    %c0_i32 = arith.constant 0 : i32
    %c0_i32_0 = arith.constant 0 : i32
    %c0_i32_1 = arith.constant 0 : i32
    return %c0_i32, %c0_i32_0 : i32, i32
  }
  func.func @transform_2(%arg0: i32, %arg1: i32) -> (i32, i32) {
    %c0_i32 = arith.constant 0 : i32
    %c0_i32_0 = arith.constant 0 : i32
    %c0_i32_1 = arith.constant 0 : i32
    return %c0_i32, %c0_i32_0 : i32, i32
  }
  func.func @transform_3(%arg0: i32, %arg1: i32) -> (i32, i32) {
    %c0_i32 = arith.constant 0 : i32
    %c0_i32_0 = arith.constant 0 : i32
    %c0_i32_1 = arith.constant 0 : i32
    return %c0_i32, %c0_i32_0 : i32, i32
  }
  func.func @transform_4(%arg0: i32, %arg1: i32) -> (i32, i32) {
    %c0_i32 = arith.constant 0 : i32
    %c0_i32_0 = arith.constant 0 : i32
    %c0_i32_1 = arith.constant 0 : i32
    return %c0_i32, %c0_i32_0 : i32, i32
  }
  func.func @transform_5(%arg0: i32, %arg1: i32) -> (i32, i32, i32) {
    %c0_i32 = arith.constant 0 : i32
    %c0_i32_0 = arith.constant 0 : i32
    %c0_i32_1 = arith.constant 0 : i32
    return %arg0, %c0_i32, %c0_i32_0 : i32, i32, i32
  }
}

</mosaic_0001>

<llo_original>
// kernel: tpu_custom_call.1
$region0: #{tpu_custom_call.1}
  #allocation0 [shape = 'u32[]', space=smem, size = 0x4, offset = 0x4, fixed_abs, tag = 'smem constant byte address 0x4 - core index']
  #allocation1 [shape = 'u32[72,128]{1,0:T(1,128)}', space=vmem, size = 0x9000, scoped, tag = 'internal scratch']
  #allocation2 [shape = 'f32[1,16]{1,0:T(1,128)}', space=vmem, size = 0x200, scoped, tag = 'scratch operand']
  %s0 = inlined_call_operand.hbm [shape: f32[2,16,256], index: 0, kind: input, shape index: {}]
  %s1 = inlined_call_operand.vmem [shape: f32[16,8], index: 1, kind: input, shape index: {}]
  %s2 = inlined_call_operand.vmem [shape: f32[1,8], index: 2, kind: input, shape index: {}]
  %s3 = inlined_call_operand.vmem [shape: f32[8,16], index: 3, kind: input, shape index: {}]
  %s4 = inlined_call_operand.vmem [shape: f32[1,16], index: 4, kind: input, shape index: {}]
  %s5 = inlined_call_operand.vmem [shape: f32[2,16,1], index: 5, kind: output, shape index: {}]
  %s6 = sld [smem:[#allocation0]]
  $region65: #{tpu_custom_call.1} parent=0
    _
  %s8 = ssub.s32 1, %s6
  %s9 = scalar_select 0, %s8, %s6
  $region1: #{tpu_custom_call.1} parent=0
    #allocation3 [shape = 'u8[32768]{0}', space=vmem, size = 0x8000, scoped, tag = 'input window, operand 0']
    #allocation4 [shape = 's32[2]{0}', space=sflag, size = 0x8, scoped, tag = 'scoped memory for tpu_custom_call.1']
    %10 = vsyncpa [#allocation4], 0
    %s11 = scalar_lea.sflag [#allocation4], 1
    %12 = vsyncpa %s11, 0
    loop: start=0, step=1, limit=4
    $region2: #{tpu_custom_call.1} parent=1 // loop_pre_header
      _
    $region3: #{tpu_custom_call.1} parent=1 // loop_header
      %s14 = sphi 0, %s18
      %p15 = scmp.ge.s32.totalorder %s14, 4
      %s21 = sphi 0, %s33
      %s22 = sphi 0, %s29
      %s23 = sphi 0, %s21
      %s24 = sphi 0, %s22
      %s25 = sphi 0, %s23
      %s26 = sphi 0, %s24
      %s38 = sphi 0, %s40
      %s41 = sphi 0, %s38
      %s42 = sphi 0, %s41
      %s58 = sphi 0, %s42
      %s62 = sphi 0, %s62
      %s64 = sphi 0, %s62
      %s65 = sphi 0, %s64
      %s79 = sphi 0, %s65
      %s83 = sphi 0, %s83
      %s85 = sphi 0, %s83
      %s86 = sphi 0, %s85
      %s100 = sphi 0, %s86
      %s104 = sphi 0, %s104
      %s106 = sphi 0, %s104
      %s107 = sphi 0, %s106
      %s121 = sphi 0, %s107
      %s125 = sphi 0, %s125
      %s127 = sphi 0, %s125
      %s128 = sphi 0, %s127
      %s142 = sphi 0, %s128
      %s148 = sphi 0, %s150
      %s151 = sphi 0, %s148
      %s152 = sphi 0, %s151
      %s168 = sphi 0, %s152
    $region4: #{tpu_custom_call.1} parent=1 // loop_header_branch
      %17 = sbr.rel (%p15) target = $region8
    $region5: #{tpu_custom_call.1} parent=1 // loop_body
      %s19 = ssub.s32 %s14, 1
      %s20 = ssub.s32 %s14, 2
      %s27 = sadd.s32 1, %s22
      %p28 = scmp.ge.s32.totalorder %s27, 1
      %s29 = scalar_select %p28, 0, %s27
      %s30 = sadd.s32 1, %s21
      %s31 = scalar_select %p28, %s30, %s21
      %p32 = scmp.ge.s32.totalorder %s31, 2
      %s33 = scalar_select %p32, 0, %s31
      %s34 = ssub.s32 %s21, %s33
      %s35 = ssub.s32 %s22, %s29
      %s36 = sor.u32 %s34, %s35
      %p37 = scmp.eq.s32.totalorder %s36, 0
      %s39 = sadd.s32 %s38, 1
      %s40 = scalar_select %p37, %s38, %s39
      %p43 = pneg %p37
      %p44 = scmp.eq.s32.totalorder %s14, 1
      %p45 = por %p43, %p44
      %p46 = scmp.ne.s32.totalorder %s38, %s41
      %p47 = scmp.eq.s32.totalorder %s14, 0
      %p48 = por %p46, %p47
      %p49 = scmp.ne.s32.totalorder %s38, %s41
      %p50 = scmp.eq.s32.totalorder %s19, 1
      %p51 = por %p49, %p50
      %p52 = scmp.ne.s32.totalorder %s41, %s42
      %p53 = scmp.eq.s32.totalorder %s19, 0
      %p54 = por %p52, %p53
      %p55 = scmp.ne.s32.totalorder %s41, %s42
      %p56 = scmp.eq.s32.totalorder %s20, 1
      %p57 = por %p55, %p56
      %p59 = scmp.ne.s32.totalorder %s42, %s58
      %p60 = scmp.eq.s32.totalorder %s20, 0
      %p61 = por %p59, %p60
      %s63 = sadd.s32 %s62, 1
      %p66 = scmp.eq.s32.totalorder %s14, 1
      %p67 = scmp.ne.s32.totalorder %s62, %s64
      %p68 = scmp.eq.s32.totalorder %s14, 0
      %p69 = por %p67, %p68
      %p70 = scmp.ne.s32.totalorder %s62, %s64
      %p71 = scmp.eq.s32.totalorder %s19, 1
      %p72 = por %p70, %p71
      %p73 = scmp.ne.s32.totalorder %s64, %s65
      %p74 = scmp.eq.s32.totalorder %s19, 0
      %p75 = por %p73, %p74
      %p76 = scmp.ne.s32.totalorder %s64, %s65
      %p77 = scmp.eq.s32.totalorder %s20, 1
      %p78 = por %p76, %p77
      %p80 = scmp.ne.s32.totalorder %s65, %s79
      %p81 = scmp.eq.s32.totalorder %s20, 0
      %p82 = por %p80, %p81
      %s84 = sadd.s32 %s83, 1
      %p87 = scmp.eq.s32.totalorder %s14, 1
      %p88 = scmp.ne.s32.totalorder %s83, %s85
      %p89 = scmp.eq.s32.totalorder %s14, 0
      %p90 = por %p88, %p89
      %p91 = scmp.ne.s32.totalorder %s83, %s85
      %p92 = scmp.eq.s32.totalorder %s19, 1
      %p93 = por %p91, %p92
      %p94 = scmp.ne.s32.totalorder %s85, %s86
      %p95 = scmp.eq.s32.totalorder %s19, 0
      %p96 = por %p94, %p95
      %p97 = scmp.ne.s32.totalorder %s85, %s86
      %p98 = scmp.eq.s32.totalorder %s20, 1
      %p99 = por %p97, %p98
      %p101 = scmp.ne.s32.totalorder %s86, %s100
      %p102 = scmp.eq.s32.totalorder %s20, 0
      %p103 = por %p101, %p102
      %s105 = sadd.s32 %s104, 1
      %p108 = scmp.eq.s32.totalorder %s14, 1
      %p109 = scmp.ne.s32.totalorder %s104, %s106
      %p110 = scmp.eq.s32.totalorder %s14, 0
      %p111 = por %p109, %p110
      %p112 = scmp.ne.s32.totalorder %s104, %s106
      %p113 = scmp.eq.s32.totalorder %s19, 1
      %p114 = por %p112, %p113
      %p115 = scmp.ne.s32.totalorder %s106, %s107
      %p116 = scmp.eq.s32.totalorder %s19, 0
      %p117 = por %p115, %p116
      %p118 = scmp.ne.s32.totalorder %s106, %s107
      %p119 = scmp.eq.s32.totalorder %s20, 1
      %p120 = por %p118, %p119
      %p122 = scmp.ne.s32.totalorder %s107, %s121
      %p123 = scmp.eq.s32.totalorder %s20, 0
      %p124 = por %p122, %p123
      %s126 = sadd.s32 %s125, 1
      %p129 = scmp.eq.s32.totalorder %s14, 1
      %p130 = scmp.ne.s32.totalorder %s125, %s127
      %p131 = scmp.eq.s32.totalorder %s14, 0
      %p132 = por %p130, %p131
      %p133 = scmp.ne.s32.totalorder %s125, %s127
      %p134 = scmp.eq.s32.totalorder %s19, 1
      %p135 = por %p133, %p134
      %p136 = scmp.ne.s32.totalorder %s127, %s128
      %p137 = scmp.eq.s32.totalorder %s19, 0
      %p138 = por %p136, %p137
      %p139 = scmp.ne.s32.totalorder %s127, %s128
      %p140 = scmp.eq.s32.totalorder %s20, 1
      %p141 = por %p139, %p140
      %p143 = scmp.ne.s32.totalorder %s128, %s142
      %p144 = scmp.eq.s32.totalorder %s20, 0
      %p145 = por %p143, %p144
      %s146 = ssub.s32 %s21, %s33
      %p147 = scmp.eq.s32.totalorder %s146, 0
      %s149 = sadd.s32 %s148, 1
      %s150 = scalar_select %p147, %s148, %s149
      %p153 = pneg %p147
      %p154 = scmp.eq.s32.totalorder %s14, 1
      %p155 = por %p153, %p154
      %p156 = scmp.ne.s32.totalorder %s148, %s151
      %p157 = scmp.eq.s32.totalorder %s14, 0
      %p158 = por %p156, %p157
      %p159 = scmp.ne.s32.totalorder %s148, %s151
      %p160 = scmp.eq.s32.totalorder %s19, 1
      %p161 = por %p159, %p160
      %p162 = scmp.ne.s32.totalorder %s151, %s152
      %p163 = scmp.eq.s32.totalorder %s19, 0
      %p164 = por %p162, %p163
      %p165 = scmp.ne.s32.totalorder %s151, %s152
      %p166 = scmp.eq.s32.totalorder %s20, 1
      %p167 = por %p165, %p166
      %p169 = scmp.ne.s32.totalorder %s152, %s168
      %p170 = scmp.eq.s32.totalorder %s20, 0
      %p171 = por %p169, %p170
      %p172 = scmp.le.s32.totalorder 1, %s14
      %p173 = scmp.lt.s32.totalorder %s14, 3
      %p174 = pnand %p172, %p173
      %p175 = pneg %p174
      // Predicated region
      $region9: #{tpu_custom_call.1} parent=5 // pred_check
        _
      $region10: #{tpu_custom_call.1} parent=5 // pred_check_branch
        %177 = sbr.rel (%p174) target = $region12
      $region11: #{tpu_custom_call.1} parent=5 // pred_region
        %s178 = ssub.s32 %s14, 1
        // Predicated region
        $region13: #{tpu_custom_call.1} parent=11 // pred_check
          %p179 = pneg %p75
        $region14: #{tpu_custom_call.1} parent=11 // pred_check_branch
          %181 = sbr.rel (%p179) target = $region16
        $region15: #{tpu_custom_call.1} parent=11 // pred_region
          _
        $region16: #{tpu_custom_call.1} parent=11 // pred_fallthru
          _
        // Predicated region
        $region17: #{tpu_custom_call.1} parent=11 // pred_check
          %p182 = pneg %p96
        $region18: #{tpu_custom_call.1} parent=11 // pred_check_branch
          %184 = sbr.rel (%p182) target = $region20
        $region19: #{tpu_custom_call.1} parent=11 // pred_region
          _
        $region20: #{tpu_custom_call.1} parent=11 // pred_fallthru
          _
        // Predicated region
        $region21: #{tpu_custom_call.1} parent=11 // pred_check
          %p185 = pneg %p117
        $region22: #{tpu_custom_call.1} parent=11 // pred_check_branch
          %187 = sbr.rel (%p185) target = $region24
        $region23: #{tpu_custom_call.1} parent=11 // pred_region
          _
        $region24: #{tpu_custom_call.1} parent=11 // pred_fallthru
          _
        // Predicated region
        $region25: #{tpu_custom_call.1} parent=11 // pred_check
          %p188 = pneg %p138
        $region26: #{tpu_custom_call.1} parent=11 // pred_check_branch
          %190 = sbr.rel (%p188) target = $region28
        $region27: #{tpu_custom_call.1} parent=11 // pred_region
          _
        $region28: #{tpu_custom_call.1} parent=11 // pred_fallthru
          _
      $region12: #{tpu_custom_call.1} parent=5 // pred_fallthru
        _
      %p191 = scmp.lt.s32.totalorder %s14, 2
      // Predicated region
      $region29: #{tpu_custom_call.1} parent=5 // pred_check
        %p192 = pneg %p191
      $region30: #{tpu_custom_call.1} parent=5 // pred_check_branch
        %194 = sbr.rel (%p192) target = $region32
      $region31: #{tpu_custom_call.1} parent=5 // pred_region
        // Predicated region
        $region33: #{tpu_custom_call.1} parent=31 // pred_check
          %p195 = pneg %p48
        $region34: #{tpu_custom_call.1} parent=31 // pred_check_branch
          %197 = sbr.rel (%p195) target = $region36
        $region35: #{tpu_custom_call.1} parent=31 // pred_region
          %s198 = sand.u32 %s38, 1
          %s199 = scalar_lea.sflag [#allocation4], %s198
          %s200 = sand.u32 %s38, 1
          %s201 = smul.addr %s200, 32
          %s202 = scalar_lea.vmem [#allocation3], %s201
          %s203 = smul.u32 2, %s22
          %205 = vsyncadd %s199, 0
          %s206 = smul.addr %s21, 4
          %s207 = sadd.s32 %s203, %s206
          %s208 = smul.addr %s207, 8
          %s209 = scalar_lea.hbm %s0, %s208
          %s210 = sshll.u32 %s209, 4
          %s211 = int_to_ptr.hbm [resolvable:$true] %s210
          %s212 = sshll.u32 %s202, 4
          %s213 = int_to_ptr.vmem [resolvable:$true] %s212
          %218 = dma.hbm_to_vmem [thread:$0]  %s211, 512, %s213, %s199, 256, 256, 16
        $region36: #{tpu_custom_call.1} parent=31 // pred_fallthru
          _
      $region32: #{tpu_custom_call.1} parent=5 // pred_fallthru
        _
      %p219 = scmp.le.s32.totalorder 1, %s14
      %p220 = scmp.lt.s32.totalorder %s14, 3
      %p221 = pnand %p219, %p220
      %p222 = pneg %p221
      // Predicated region
      $region37: #{tpu_custom_call.1} parent=5 // pred_check
        _
      $region38: #{tpu_custom_call.1} parent=5 // pred_check_branch
        %224 = sbr.rel (%p221) target = $region40
      $region39: #{tpu_custom_call.1} parent=5 // pred_region
        %s225 = ssub.s32 %s14, 1
        %s226 = sand.u32 %s41, 1
        %s227 = scalar_lea.sflag [#allocation4], %s226
        %s228 = sand.u32 %s41, 1
        %s229 = smul.addr %s228, 32
        %s230 = scalar_lea.vmem [#allocation3], %s229
        // Predicated region
        $region41: #{tpu_custom_call.1} parent=39 // pred_check
          %p231 = pneg %p54
        $region42: #{tpu_custom_call.1} parent=39 // pred_check_branch
          %233 = sbr.rel (%p231) target = $region44
        $region43: #{tpu_custom_call.1} parent=39 // pred_region
          %235 = dma.done %s227, 512
        $region44: #{tpu_custom_call.1} parent=39 // pred_fallthru
          _
        %s236 = sand.u32 %s41, 1
        %s237 = scalar_lea.sflag [#allocation4], %s236
        %s238 = sand.u32 %s41, 1
        %s239 = smul.addr %s238, 32
        %s240 = scalar_lea.vmem [#allocation3], %s239
        %p241 = pneg %p54
        %p242 = pneg %p51
        %p243 = pneg %p75
        %p244 = pneg %p72
        %p245 = pneg %p96
        %p246 = pneg %p93
        %p247 = pneg %p117
        %p248 = pneg %p114
        %p249 = pneg %p138
        %p250 = pneg %p135
        %p251 = pneg %p164
        %p252 = pneg %p161
        %p253 = scmp.lt.s32.totalorder %s23, 1
        %s254 = scalar_select %p253, %s23, 1
        %s255 = smul.addr %s254, 2
        %s256 = smul.addr %s255, 8
        %s257 = scalar_lea.vmem %s5, %s256
        %s258 = smul.u32 2, %s24
        %p259 = scmp.lt.s32.totalorder %s23, 1
        %s260 = scalar_select %p259, %s23, 1
        %s261 = smul.addr %s260, 2
        %s262 = smul.addr %s261, 8
        %s263 = scalar_lea.vmem %s5, %s262
        %p264 = scmp.eq.s32.totalorder %s24, 0
        // Predicated region
        $region45: #{tpu_custom_call.1} parent=39 // pred_check
          %p265 = pneg %p264
        $region46: #{tpu_custom_call.1} parent=39 // pred_check_branch
          %267 = sbr.rel (%p265) target = $region48
        $region47: #{tpu_custom_call.1} parent=39 // pred_region
          %vm268 = vcmask 122880
          %269 = vst.msk [vmem:[#allocation2] sm:$0x1] %vm268, 0.0
        $region48: #{tpu_custom_call.1} parent=39 // pred_fallthru
          _
        %v270 = vld [vmem:[%s230] sm:$0xff]
        %v271 = vld [vmem:[%s230 + $0x8] sm:$0xff]
        %v272 = vld [vmem:[%s230 + $0x10] sm:$0xff]
        %v273 = vld [vmem:[%s230 + $0x18] sm:$0xff]
        %v274 = vld [vmem:[#allocation2] sm:$0x1]
        %v275 = vadd.f32 %v270, %v271
        %276 = vadd.xlane.f32.xlu0 %v275
        %v277 = vpop.xlane.xlu0 %276
        %v278 = vadd.f32 %v272, %v273
        %279 = vadd.xlane.f32.xlu0 %v278
        %v280 = vpop.xlane.xlu0 %279
        %v283 = vperm.slane %v277, 0
        %v284 = vperm.slane %v277, 1
        %v285 = vperm.slane %v277, 2
        %v286 = vperm.slane %v277, 3
        %v287 = vperm.slane %v277, 4
        %v288 = vperm.slane %v277, 5
        %v289 = vperm.slane %v277, 6
        %v290 = vperm.slane %v277, 7
        %v291 = vperm.slane %v280, 0
        %v292 = vperm.slane %v280, 1
        %v293 = vperm.slane %v280, 2
        %v294 = vperm.slane %v280, 3
        %v295 = vperm.slane %v280, 4
        %v296 = vperm.slane %v280, 5
        %v297 = vperm.slane %v280, 6
        %v298 = vperm.slane %v280, 7
        %299 = vst [vmem:[#allocation1] ss:$9 sm:$0xff] %v283
        %s300 = scalar_lea.vmem [#allocation1], 1
        %301 = vst [vmem:[%s300] ss:$9 sm:$0xff] %v284
        %s302 = scalar_lea.vmem [#allocation1], 2
        %303 = vst [vmem:[%s302] ss:$9 sm:$0xff] %v285
        %s304 = scalar_lea.vmem [#allocation1], 3
        %305 = vst [vmem:[%s304] ss:$9 sm:$0xff] %v286
        %s306 = scalar_lea.vmem [#allocation1], 4
        %307 = vst [vmem:[%s306] ss:$9 sm:$0xff] %v287
        %s308 = scalar_lea.vmem [#allocation1], 5
        %309 = vst [vmem:[%s308] ss:$9 sm:$0xff] %v288
        %s310 = scalar_lea.vmem [#allocation1], 6
        %311 = vst [vmem:[%s310] ss:$9 sm:$0xff] %v289
        %s312 = scalar_lea.vmem [#allocation1], 7
        %313 = vst [vmem:[%s312] ss:$9 sm:$0xff] %v290
        %v314 = vld [vmem:[#allocation1] sm:$0xff]
        %315 = vst [vmem:[#allocation1] ss:$9 sm:$0xff] %v291
        %316 = vst [vmem:[%s300] ss:$9 sm:$0xff] %v292
        %317 = vst [vmem:[%s302] ss:$9 sm:$0xff] %v293
        %318 = vst [vmem:[%s304] ss:$9 sm:$0xff] %v294
        %319 = vst [vmem:[%s306] ss:$9 sm:$0xff] %v295
        %320 = vst [vmem:[%s308] ss:$9 sm:$0xff] %v296
        %321 = vst [vmem:[%s310] ss:$9 sm:$0xff] %v297
        %322 = vst [vmem:[%s312] ss:$9 sm:$0xff] %v298
        %v323 = vld [vmem:[#allocation1] sm:$0xff]
        %324 = vset.pattern.permute.xlu0 0
        %325 = vperm.xlu0 %324, %v314
        %v326 = vpop.permute.xlu0 %325
        %327 = vset.pattern.permute.xlu0 0
        %328 = vperm.xlu0 %327, %v323
        %v329 = vpop.permute.xlu0 %328
        %v330 = vlaneseq
        %v331 = vand.u32 %v330, 127
        %v332 = vperm.slane %v326, %v331
        %v333 = vadd.s32 %v331, 4294967288
        %v334 = vperm.slane %v329, %v333
        %vm335 = vcmask 130112
        %v336 = vsel %vm335, %v334, %v332
        %v338 = vadd.f32 %v274, %v336
        %vm339 = vcmask 122880
        %340 = vst.msk [vmem:[#allocation2] sm:$0x1] %vm339, %v338
        // Predicated region
        $region49: #{tpu_custom_call.1} parent=39 // pred_check
          %p341 = pneg %p264
        $region50: #{tpu_custom_call.1} parent=39 // pred_check_branch
          %343 = sbr.rel (%p341) target = $region52
        $region51: #{tpu_custom_call.1} parent=39 // pred_region
          %v344 = vld [vmem:[#allocation2] sm:$0x1]
          %v345 = vmul.f32 %v344, 0.00390625
          %v346 = vld [vmem:[%s1] sm:$0xff]
          %v347 = vld [vmem:[%s1 + $0x8] sm:$0xff]
          %v348 = vld [vmem:[%s2] sm:$0x1]
          %vm349 = vcmask 130048
          %v351 = vsel %vm349, %v345, 0
          %353 = vmatpush.msra.mxu0 0.0
          %354 = vmatpush.msra.mxu0 0.0
          %355 = vmatpush.msra.mxu0 0.0
          %356 = vmatpush.msra.mxu0 0.0
          %357 = vmatpush.msra.mxu0 0.0
          %358 = vmatpush.msra.mxu0 0.0
          %359 = vmatpush.msra.mxu0 0.0
          %360 = vmatpush.msra.mxu0 0.0
          %361 = vmatpush.msra.mxu0 0.0
          %362 = vmatpush.msra.mxu0 0.0
          %363 = vmatpush.msra.mxu0 0.0
          %364 = vmatpush.msra.mxu0 0.0
          %365 = vmatpush.msra.mxu0 0.0
          %366 = vmatpush.msra.mxu0 0.0
          %367 = vmatpush.msra.mxu0 %v347
          %368 = vmatpush.msra.mxu0 %v346
          %369 = vmatmul.f32.gmra.mxu0 %v351
          %v370 = vpop.f32.mrf.mxu0
          %v371 = vadd.f32 %v348, %v370
          %372 = vdwg.mxu0
          %v373 = vmax.f32 %v371, 0.0
          %v374 = vld [vmem:[%s3] sm:$0xff]
          %v375 = vld [vmem:[%s4] sm:$0x1]
          %vm376 = vcmask 64512
          %v378 = vsel %vm376, %v373, 0
          %380 = vmatpush.msra.mxu0 0.0
          %381 = vmatpush.msra.mxu0 0.0
          %382 = vmatpush.msra.mxu0 0.0
          %383 = vmatpush.msra.mxu0 0.0
          %384 = vmatpush.msra.mxu0 0.0
          %385 = vmatpush.msra.mxu0 0.0
          %386 = vmatpush.msra.mxu0 0.0
          %387 = vmatpush.msra.mxu0 0.0
          %388 = vmatpush.msra.mxu0 0.0
          %389 = vmatpush.msra.mxu0 0.0
          %390 = vmatpush.msra.mxu0 0.0
          %391 = vmatpush.msra.mxu0 0.0
          %392 = vmatpush.msra.mxu0 0.0
          %393 = vmatpush.msra.mxu0 0.0
          %394 = vmatpush.msra.mxu0 0.0
          %395 = vmatpush.msra.mxu0 %v374
          %396 = vmatmul.f32.gmra.mxu0 %v378
          %v397 = vpop.f32.mrf.mxu0
          %v398 = vadd.f32 %v375, %v397
          %399 = vdwg.mxu0
          %v400 = vadd.f32 %v398, 3.0
          %v401 = vmax.f32 %v400, 0.0
          %v402 = vmin.f32 %v401, 6.0
          %v403 = vmul.f32 %v402, 0.16666667
          %v404 = vperm.slane %v403, 0
          %v405 = vlaneseq
          %v406 = vshrl.u32 %v405, 7
          %408 = vset.pattern.permute.xlu0 %v406
          %409 = vperm.xlu0 %408, %v404
          %v410 = vpop.permute.xlu0 %409
          %v411 = vlaneseq
          %v412 = vshrl.u32 %v411, 7
          %v413 = vadd.s32 %v412, 8
          %414 = vset.pattern.permute.xlu0 %v413
          %415 = vperm.xlu0 %414, %v404
          %v416 = vpop.permute.xlu0 %415
          %vm417 = vcmask 7168
          %418 = vst.msk [vmem:[%s263] sm:$0xff] %vm417, %v410
          %419 = vst.msk [vmem:[%s263 + $0x8] sm:$0xff] %vm417, %v416
        $region52: #{tpu_custom_call.1} parent=39 // pred_fallthru
          _
        %p420 = scmp.lt.s32.totalorder %s23, 1
        %s421 = scalar_select %p420, %s23, 1
        %s422 = smul.addr %s421, 2
        %s423 = smul.addr %s422, 8
        %s424 = scalar_lea.vmem %s5, %s423
        // Predicated region
        $region53: #{tpu_custom_call.1} parent=39 // pred_check
          %p425 = pneg %p161
        $region54: #{tpu_custom_call.1} parent=39 // pred_check_branch
          %427 = sbr.rel (%p425) target = $region56
        $region55: #{tpu_custom_call.1} parent=39 // pred_region
          _
        $region56: #{tpu_custom_call.1} parent=39 // pred_fallthru
          _
      $region40: #{tpu_custom_call.1} parent=5 // pred_fallthru
        _
      %p428 = scmp.le.s32.totalorder 2, %s14
      // Predicated region
      $region57: #{tpu_custom_call.1} parent=5 // pred_check
        %p429 = pneg %p428
      $region58: #{tpu_custom_call.1} parent=5 // pred_check_branch
        %431 = sbr.rel (%p429) target = $region60
      $region59: #{tpu_custom_call.1} parent=5 // pred_region
        %s432 = ssub.s32 %s14, 2
        // Predicated region
        $region61: #{tpu_custom_call.1} parent=59 // pred_check
          %p433 = pneg %p167
        $region62: #{tpu_custom_call.1} parent=59 // pred_check_branch
          %435 = sbr.rel (%p433) target = $region64
        $region63: #{tpu_custom_call.1} parent=59 // pred_region
          %p436 = scmp.lt.s32.totalorder %s25, 1
          %s437 = scalar_select %p436, %s25, 1
          %s438 = smul.addr %s437, 2
          %s439 = smul.addr %s438, 8
          %s440 = scalar_lea.vmem %s5, %s439
        $region64: #{tpu_custom_call.1} parent=59 // pred_fallthru
          _
      $region60: #{tpu_custom_call.1} parent=5 // pred_fallthru
        _
    $region6: #{tpu_custom_call.1} parent=1 // loop_footer
      %s18 = sadd.s32 1, %s14
    $region7: #{tpu_custom_call.1} parent=1 // loop_footer_branch
      %13 = sbr.rel target = $region3
    $region8: #{tpu_custom_call.1} parent=1 // loop_exit
      _
    %441 = vsyncpa [#allocation4], 1
    %s442 = scalar_lea.sflag [#allocation4], 1
    %443 = vsyncpa %s442, 1

</llo_original>
